<compile_context>
chip_gen: v7x
topology: tpu7x:2x2x1
jax: 0.10.0
libtpu: 0.0.40
codegen_flags: <defaults>
</compile_context>

<pallas_src>
import math

import jax
import jax.numpy as jnp
from jax.experimental import pallas as pl
from jax.experimental.pallas import tpu as pltpu

BN_EPS = 1e-5
_LANES = 128


def _round_up(x, m):
    return -(-x // m) * m


# --------------------------------------------------------------------------
# Kernel body
# --------------------------------------------------------------------------
def _phasenet_kernel(add_residual: bool, compute_dtype):
    """Returns the kernel body; flags/dtypes are static Python values."""

    def kernel(x_ref, w1_ref, b1_ref, w2_ref, b2_ref, w3_ref, b3_ref, o_ref):
        x = x_ref[...]

        # encoder: Linear -> ReLU   (BN eval scale folded into w1, Dropout = id)
        t = jnp.dot(x.astype(compute_dtype), w1_ref[...],
                    preferred_element_type=jnp.float32) + b1_ref[...]
        t = jnp.maximum(t, 0.0)
        if add_residual:  # only when hidden_dim == input_dim (static shapes)
            t = t + x.astype(jnp.float32)

        # middle: Linear -> ReLU
        u = jnp.dot(t.astype(compute_dtype), w2_ref[...],
                    preferred_element_type=jnp.float32) + b2_ref[...]
        u = jnp.maximum(u, 0.0)

        # decoder: Linear -> Hardtanh (== final clamp; applied once)
        y = jnp.dot(u.astype(compute_dtype), w3_ref[...],
                    preferred_element_type=jnp.float32) + b3_ref[...]
        o_ref[...] = jnp.clip(y, -1.0, 1.0).astype(o_ref.dtype)

    return kernel


# --------------------------------------------------------------------------
# Parameters
# --------------------------------------------------------------------------
def init_params(key, input_dim, hidden_dim, output_dim):
    """Deterministic init matching PhaseNet._initialize_weights:
    kaiming_normal_ (fan_in, gain=sqrt(2)) for Linear weights, zero biases.
    Weights stored transposed (in, out)."""
    middle_dim = hidden_dim // 2
    k1, k2, k3 = jax.random.split(key, 3)

    def kaiming(k, fan_in, fan_out):
        std = math.sqrt(2.0 / fan_in)
        w = jax.random.normal(k, (fan_out, fan_in), dtype=jnp.float32) * std
        return jnp.transpose(w)

    return {
        "w1": kaiming(k1, input_dim, hidden_dim),
        "b1": jnp.zeros((1, hidden_dim), jnp.float32),
        "w2": kaiming(k2, hidden_dim, middle_dim),
        "b2": jnp.zeros((1, middle_dim), jnp.float32),
        "w3": kaiming(k3, middle_dim, output_dim),
        "b3": jnp.zeros((1, output_dim), jnp.float32),
    }


def fold_params(params, compute_dtype=jnp.bfloat16):
    """One-time (init-time) fold:
      1. BatchNorm eval scale inv = 1/sqrt(1+eps) folded into w1/w2/w3
         (exact also for the residual path: h = inv*(ReLU(x@w1')+x), and the
         common inv factor is absorbed by w2').
      2. Lane-density fold by factor F: weights become block-diagonal
         (F*d_in, F*d_out) so the kernel operates on (rows/F, F*d) slabs that
         are 128-lane dense; biases are tiled F times along the feature axis.
         The output dim is zero-padded (columns of w3/b3) when that lets a
         smaller F be used (e.g. d_out 8 -> 16 gives F=8 instead of 16).
      3. Weights cast to `compute_dtype` (bf16 by default) for single-pass MXU.
    """
    w1, b1 = params["w1"], params["b1"]
    w2, b2 = params["w2"], params["b2"]
    w3, b3 = params["w3"], params["b3"]
    d_in, d_h = w1.shape
    d_mid = w2.shape[1]
    d_out = w3.shape[1]

    inv = 1.0 / math.sqrt(1.0 + BN_EPS)

    # Pick (F, d_out_pad) minimizing the fold factor first, then padded lanes.
    f_in = _LANES // math.gcd(_LANES, d_in)
    best = None
    for cand in range(d_out, d_out + _LANES):
        f_o = _LANES // math.gcd(_LANES, cand)
        F_c = f_in * f_o // math.gcd(f_in, f_o)            # lcm(f_in, f_o)
        key = (F_c, F_c * (cand - d_out), cand)
        if best is None or key < best:
            best = key
    F, _, d_out_pad = best
    if F * max(d_in, d_h, d_mid, d_out_pad) > 2048:
        # Folded weights would be too large; fall back to the plain layout.
        # Still correct; only the output stores become masked (perf cliff).
        F, d_out_pad = 1, d_out

    w3p = jnp.pad(w3, ((0, 0), (0, d_out_pad - d_out)))
    b3p = jnp.pad(b3, ((0, 0), (0, d_out_pad - d_out)))

    def block_diag(w):
        w = w.astype(jnp.float32)
        if F > 1:
            w = jnp.kron(jnp.eye(F, dtype=w.dtype), w)
        return w.astype(compute_dtype)

    def tile_bias(b):
        b = b.astype(jnp.float32)
        return b if F == 1 else jnp.tile(b, (1, F))

    return {
        "w1": block_diag(inv * w1), "b1": tile_bias(b1),
        "w2": block_diag(inv * w2), "b2": tile_bias(b2),
        "w3": block_diag(inv * w3p), "b3": tile_bias(b3p),
        "fold": F,
        "dims": (d_in, d_h, d_mid, d_out, d_out_pad),
        "compute_dtype": compute_dtype,
        "add_residual": bool(d_h == d_in),
    }


# --------------------------------------------------------------------------
# Per-generation knobs
# --------------------------------------------------------------------------
def _vmem_limit_bytes():
    """~3/4 of the chip's VMEM: ~48 MiB on v7x (64 MiB), ~96 MiB on v5e/v6e."""
    cap = 64 * 1024 * 1024
    try:
        info = pltpu.get_tpu_info()
        cap = int(getattr(info, "vmem_capacity_bytes", cap))
    except Exception:
        pass
    return max(32 * 1024 * 1024, min(int(cap * 3 // 4), 112 * 1024 * 1024))


def _default_io_dtype():
    """bf16 HBM I/O on v5e (x/out bytes dominate its HBM roofline), f32 else."""
    try:
        kind = jax.devices()[0].device_kind.lower()
    except Exception:
        return jnp.float32
    if "v5e" in kind or "v5 lite" in kind or "v5lite" in kind:
        return jnp.bfloat16
    return jnp.float32


# --------------------------------------------------------------------------
# Wrapper
# --------------------------------------------------------------------------
def phasenet_forward(x, folded, io_dtype=None):
    """x: (B, input_dim) (or (B,1,D) / (D,) torch-style). folded: fold_params()."""
    if io_dtype is None:
        io_dtype = _default_io_dtype()

    # Mimic PyTorch shape handling (wrapper glue, not hot path).
    if x.ndim == 3:
        x = jnp.squeeze(x, axis=1)
    elif x.ndim == 1:
        x = x[None, :]
    x = x.astype(io_dtype)

    d_in, d_h, d_mid, d_out, d_out_pad = folded["dims"]
    F = folded["fold"]
    compute_dtype = folded["compute_dtype"]
    B = x.shape[0]
    itemsize = jnp.dtype(io_dtype).itemsize

    vmem_limit = _vmem_limit_bytes()

    # Batch tile (in folded-row units): double-buffered x/out tiles plus the
    # f32 intermediates must stay within ~half the VMEM limit.
    per_row = (2 * F * d_in * itemsize            # x, double buffered
               + 2 * F * d_out_pad * itemsize     # out, double buffered
               + 6 * F * (d_h + d_mid + d_out_pad))  # f32 intermediates + slack
    budget = vmem_limit // 2
    TBf = max(8, min(8192, (budget // max(per_row, 1)) // 8 * 8))

    Bf = -(-B // F)
    Bf8 = _round_up(Bf, 8)
    TBf = min(TBf, Bf8)
    if Bf8 >= 16:
        # Keep >= 2 grid steps so the "parallel" axis can use both v7x TCs.
        TBf = min(TBf, _round_up(-(-Bf8 // 2), 8))
    Bf_pad = _round_up(Bf, TBf)
    B_pad = Bf_pad * F
    if B_pad != B:
        x = jnp.pad(x, ((0, B_pad - B), (0, 0)))
    # Pure row-major view: (B_pad, d_in) -> (B_pad/F, F*d_in), 128-lane dense.
    xf = x.reshape(Bf_pad, F * d_in)

    w1, b1 = folded["w1"], folded["b1"]
    w2, b2 = folded["w2"], folded["b2"]
    w3, b3 = folded["w3"], folded["b3"]

    grid = (Bf_pad // TBf,)
    const = lambda i: (0, 0)  # weights/biases: fetched once, VMEM-resident

    # Matches actual MXU work (incl. zero blocks); scheduler hint only.
    flops = 2 * Bf_pad * F * F * (d_in * d_h + d_h * d_mid + d_mid * d_out_pad)
    weight_bytes = sum(int(a.size) * a.dtype.itemsize for a in (w1, b1, w2, b2, w3, b3))
    bytes_accessed = Bf_pad * F * (d_in + d_out_pad) * itemsize + weight_bytes

    kernel = _phasenet_kernel(folded["add_residual"], compute_dtype)

    def build_and_run(single_buffer_weights):
        wkw = {"pipeline_mode": pl.Buffered(1)} if single_buffer_weights else {}
        weight_specs = [pl.BlockSpec(a.shape, const, **wkw)
                        for a in (w1, b1, w2, b2, w3, b3)]
        return pl.pallas_call(
            kernel,
            out_shape=jax.ShapeDtypeStruct((Bf_pad, F * d_out_pad), io_dtype),
            grid=grid,
            in_specs=[pl.BlockSpec((TBf, F * d_in), lambda i: (i, 0))] + weight_specs,
            out_specs=pl.BlockSpec((TBf, F * d_out_pad), lambda i: (i, 0)),
            compiler_params=pltpu.CompilerParams(
                dimension_semantics=("parallel",),   # megacore / v7x 2-TC sharding
                vmem_limit_bytes=vmem_limit,
            ),
            cost_estimate=pl.CostEstimate(
                flops=flops, transcendentals=0, bytes_accessed=bytes_accessed),
        )(xf, w1, b1, w2, b2, w3, b3)

    try:
        out = build_and_run(True)       # single-buffered weights
    except Exception:
        out = build_and_run(False)      # fallback if Buffered(1) is rejected

    # Back to (B, output_dim): drop batch padding and padded output columns.
    return out.reshape(B_pad, d_out_pad)[:B, :d_out]


# --------------------------------------------------------------------------
# Self-test
# --------------------------------------------------------------------------
if __name__ == "__main__":
    input_dim, hidden_dim, output_dim = 16, 32, 8

    key = jax.random.PRNGKey(0)
    kx, kx2, kp = jax.random.split(key, 3)
    params = init_params(kp, input_dim, hidden_dim, output_dim)

    inv = 1.0 / math.sqrt(1.0 + BN_EPS)
    add_res = hidden_dim == input_dim

    def reference(x, mirror_bf16):
        """Pure-JAX eval-mode PhaseNet.  mirror_bf16=True reproduces the
        kernel's bf16 weight/activation quantization (tight comparison);
        False is the full-f32 original-order forward (loose comparison)."""
        def q(w):
            w = inv * w
            return w.astype(jnp.bfloat16).astype(jnp.float32) if mirror_bf16 else w
        def qa(a):
            return a.astype(jnp.bfloat16).astype(jnp.float32) if mirror_bf16 else a
        w1, w2, w3 = q(params["w1"]), q(params["w2"]), q(params["w3"])
        b1, b2, b3 = params["b1"], params["b2"], params["b3"]
        t = jnp.maximum(qa(x) @ w1 + b1, 0.0)
        if add_res:
            t = t + x
        u = jnp.maximum(qa(t) @ w2 + b2, 0.0)
        y = qa(u) @ w3 + b3
        return jnp.clip(y, -1.0, 1.0)

    # --- small batch, f32 I/O, bf16 compute (default fold) ------------------
    x = jax.random.normal(kx, (8, input_dim), dtype=jnp.float32)
    folded = fold_params(params)  # bf16 weights
    out = jax.block_until_ready(phasenet_forward(x, folded, io_dtype=jnp.float32))
    assert out.shape == (8, output_dim)
    ref_m = reference(x, mirror_bf16=True)
    ref_f = reference(x, mirror_bf16=False)
    assert jnp.allclose(out, ref_m, atol=1e-4, rtol=1e-4), \
        float(jnp.max(jnp.abs(out - ref_m)))
    assert jnp.allclose(out, ref_f, atol=3e-2), \
        float(jnp.max(jnp.abs(out - ref_f)))

    # --- larger, ragged batch: exercises multi-step grid, row padding and
    #     the padded output-column slice ------------------------------------
    x2 = jax.random.normal(kx2, (1000, input_dim), dtype=jnp.float32)
    out2 = jax.block_until_ready(phasenet_forward(x2, folded, io_dtype=jnp.float32))
    ref2 = reference(x2, mirror_bf16=True)
    assert out2.shape == (1000, output_dim)
    assert jnp.allclose(out2, ref2, atol=1e-4, rtol=1e-4), \
        float(jnp.max(jnp.abs(out2 - ref2)))

    # --- exact f32 compute path (no weight quantization) --------------------
    folded_f32 = fold_params(params, compute_dtype=jnp.float32)
    out_f32 = jax.block_until_ready(phasenet_forward(x, folded_f32, io_dtype=jnp.float32))
    assert jnp.allclose(out_f32, ref_f, atol=1e-4, rtol=1e-4), \
        float(jnp.max(jnp.abs(out_f32 - ref_f)))

    # --- bf16 HBM I/O path (bandwidth saver; default on v5e) ----------------
    out_bf16 = jax.block_until_ready(phasenet_forward(x, folded, io_dtype=jnp.bfloat16))
    assert jnp.allclose(out_bf16.astype(jnp.float32), ref_f, atol=5e-2)

    print("KERNEL_OK")
</pallas_src>

<mosaic_0001>
module attributes {stable_mosaic.version = 11 : i64} {
  func.func @kernel(%arg0: i32, %arg1: memref<8x128xf32, #tpu.memory_space<vmem>>, %arg2: memref<128x256xbf16, #tpu.memory_space<vmem>>, %arg3: memref<1x256xf32, #tpu.memory_space<vmem>>, %arg4: memref<256x128xbf16, #tpu.memory_space<vmem>>, %arg5: memref<1x128xf32, #tpu.memory_space<vmem>>, %arg6: memref<128x128xbf16, #tpu.memory_space<vmem>>, %arg7: memref<1x128xf32, #tpu.memory_space<vmem>>, %arg8: memref<8x128xf32, #tpu.memory_space<vmem>>) attributes {dimension_semantics = [#tpu.dimension_semantics<parallel>], iteration_bounds = array<i64: 1>, scalar_prefetch = 0 : i64, scratch_operands = 0 : i64, tpu.core_type = #tpu.core_type<tc>, window_params = [{transform_indices = @transform_0, window_bounds = array<i64: 8, 128>}, {pipeline_mode = #tpu.pipeline_mode<synchronous>, transform_indices = @transform_1, window_bounds = array<i64: 128, 256>}, {pipeline_mode = #tpu.pipeline_mode<synchronous>, transform_indices = @transform_2, window_bounds = array<i64: 1, 256>}, {pipeline_mode = #tpu.pipeline_mode<synchronous>, transform_indices = @transform_3, window_bounds = array<i64: 256, 128>}, {pipeline_mode = #tpu.pipeline_mode<synchronous>, transform_indices = @transform_4, window_bounds = array<i64: 1, 128>}, {pipeline_mode = #tpu.pipeline_mode<synchronous>, transform_indices = @transform_5, window_bounds = array<i64: 128, 128>}, {pipeline_mode = #tpu.pipeline_mode<synchronous>, transform_indices = @transform_6, window_bounds = array<i64: 1, 128>}, {transform_indices = @transform_7, window_bounds = array<i64: 8, 128>}]} {
    %c0 = arith.constant 0 : index
    %c0_0 = arith.constant 0 : index
    %0 = vector.load %arg1[%c0, %c0_0] : memref<8x128xf32, #tpu.memory_space<vmem>>, vector<8x128xf32>
    %1 = arith.truncf %0 : vector<8x128xf32> to vector<8x128xbf16>
    %c0_1 = arith.constant 0 : index
    %c0_2 = arith.constant 0 : index
    %2 = vector.load %arg2[%c0_1, %c0_2] : memref<128x256xbf16, #tpu.memory_space<vmem>>, vector<128x256xbf16>
    %cst = arith.constant dense<0.000000e+00> : vector<8x256xf32>
    %3 = tpu.matmul %1, %2, %cst {dimension_numbers = #tpu.dot_dimension_numbers<[1], [0], [0], [1], [0, 0, 1, 1], [], []>} : vector<8x128xbf16>, vector<128x256xbf16>, vector<8x256xf32> -> vector<8x256xf32>
    %c0_3 = arith.constant 0 : index
    %c0_4 = arith.constant 0 : index
    %4 = vector.load %arg3[%c0_3, %c0_4] : memref<1x256xf32, #tpu.memory_space<vmem>>, vector<1x256xf32>
    %5 = vector.broadcast %4 : vector<1x256xf32> to vector<8x256xf32>
    %6 = arith.addf %3, %5 : vector<8x256xf32>
    %cst_5 = arith.constant 0.000000e+00 : f32
    %7 = vector.broadcast %cst_5 : f32 to vector<8x256xf32>
    %8 = arith.maximumf %6, %7 : vector<8x256xf32>
    %9 = arith.truncf %8 : vector<8x256xf32> to vector<8x256xbf16>
    %c0_6 = arith.constant 0 : index
    %c0_7 = arith.constant 0 : index
    %10 = vector.load %arg4[%c0_6, %c0_7] : memref<256x128xbf16, #tpu.memory_space<vmem>>, vector<256x128xbf16>
    %cst_8 = arith.constant dense<0.000000e+00> : vector<8x128xf32>
    %11 = tpu.matmul %9, %10, %cst_8 {dimension_numbers = #tpu.dot_dimension_numbers<[1], [0], [0], [1], [0, 0, 1, 1], [], []>} : vector<8x256xbf16>, vector<256x128xbf16>, vector<8x128xf32> -> vector<8x128xf32>
    %c0_9 = arith.constant 0 : index
    %c0_10 = arith.constant 0 : index
    %12 = vector.load %arg5[%c0_9, %c0_10] : memref<1x128xf32, #tpu.memory_space<vmem>>, vector<1x128xf32>
    %13 = vector.broadcast %12 : vector<1x128xf32> to vector<8x128xf32>
    %14 = arith.addf %11, %13 : vector<8x128xf32>
    %cst_11 = arith.constant 0.000000e+00 : f32
    %15 = vector.broadcast %cst_11 : f32 to vector<8x128xf32>
    %16 = arith.maximumf %14, %15 : vector<8x128xf32>
    %17 = arith.truncf %16 : vector<8x128xf32> to vector<8x128xbf16>
    %c0_12 = arith.constant 0 : index
    %c0_13 = arith.constant 0 : index
    %18 = vector.load %arg6[%c0_12, %c0_13] : memref<128x128xbf16, #tpu.memory_space<vmem>>, vector<128x128xbf16>
    %cst_14 = arith.constant dense<0.000000e+00> : vector<8x128xf32>
    %19 = tpu.matmul %17, %18, %cst_14 {dimension_numbers = #tpu.dot_dimension_numbers<[1], [0], [0], [1], [0, 0, 1, 1], [], []>} : vector<8x128xbf16>, vector<128x128xbf16>, vector<8x128xf32> -> vector<8x128xf32>
    %c0_15 = arith.constant 0 : index
    %c0_16 = arith.constant 0 : index
    %20 = vector.load %arg7[%c0_15, %c0_16] : memref<1x128xf32, #tpu.memory_space<vmem>>, vector<1x128xf32>
    %21 = vector.broadcast %20 : vector<1x128xf32> to vector<8x128xf32>
    %22 = arith.addf %19, %21 : vector<8x128xf32>
    %cst_17 = arith.constant -1.000000e+00 : f32
    %cst_18 = arith.constant 1.000000e+00 : f32
    %23 = vector.broadcast %cst_17 : f32 to vector<8x128xf32>
    %24 = arith.maximumf %23, %22 : vector<8x128xf32>
    %25 = vector.broadcast %cst_18 : f32 to vector<8x128xf32>
    %26 = arith.minimumf %25, %24 : vector<8x128xf32>
    %c0_19 = arith.constant 0 : index
    %c0_20 = arith.constant 0 : index
    %27 = vector.load %arg8[%c0_19, %c0_20] : memref<8x128xf32, #tpu.memory_space<vmem>>, vector<8x128xf32>
    tpu.vector_store %arg8[%c0_19, %c0_20], %26 {strides = array<i32>} : memref<8x128xf32, #tpu.memory_space<vmem>>, vector<8x128xf32>,
    return
  }
  func.func @transform_0(%arg0: i32) -> (i32, i32) {
    %c0_i32 = arith.constant 0 : i32
    %c0_i32_0 = arith.constant 0 : i32
    return %arg0, %c0_i32 : i32, i32
  }
  func.func @transform_1(%arg0: i32) -> (i32, i32) {
    %c0_i32 = arith.constant 0 : i32
    %c0_i32_0 = arith.constant 0 : i32
    %c0_i32_1 = arith.constant 0 : i32
    return %c0_i32, %c0_i32_0 : i32, i32
  }
  func.func @transform_2(%arg0: i32) -> (i32, i32) {
    %c0_i32 = arith.constant 0 : i32
    %c0_i32_0 = arith.constant 0 : i32
    %c0_i32_1 = arith.constant 0 : i32
    return %c0_i32, %c0_i32_0 : i32, i32
  }
  func.func @transform_3(%arg0: i32) -> (i32, i32) {
    %c0_i32 = arith.constant 0 : i32
    %c0_i32_0 = arith.constant 0 : i32
    %c0_i32_1 = arith.constant 0 : i32
    return %c0_i32, %c0_i32_0 : i32, i32
  }
  func.func @transform_4(%arg0: i32) -> (i32, i32) {
    %c0_i32 = arith.constant 0 : i32
    %c0_i32_0 = arith.constant 0 : i32
    %c0_i32_1 = arith.constant 0 : i32
    return %c0_i32, %c0_i32_0 : i32, i32
  }
  func.func @transform_5(%arg0: i32) -> (i32, i32) {
    %c0_i32 = arith.constant 0 : i32
    %c0_i32_0 = arith.constant 0 : i32
    %c0_i32_1 = arith.constant 0 : i32
    return %c0_i32, %c0_i32_0 : i32, i32
  }
  func.func @transform_6(%arg0: i32) -> (i32, i32) {
    %c0_i32 = arith.constant 0 : i32
    %c0_i32_0 = arith.constant 0 : i32
    %c0_i32_1 = arith.constant 0 : i32
    return %c0_i32, %c0_i32_0 : i32, i32
  }
  func.func @transform_7(%arg0: i32) -> (i32, i32) {
    %c0_i32 = arith.constant 0 : i32
    %c0_i32_0 = arith.constant 0 : i32
    return %arg0, %c0_i32 : i32, i32
  }
}

module attributes {stable_mosaic.version = 11 : i64} {
  func.func @kernel(%arg0: i32, %arg1: memref<8x128xf32, #tpu.memory_space<vmem>>, %arg2: memref<128x256xbf16, #tpu.memory_space<vmem>>, %arg3: memref<1x256xf32, #tpu.memory_space<vmem>>, %arg4: memref<256x128xbf16, #tpu.memory_space<vmem>>, %arg5: memref<1x128xf32, #tpu.memory_space<vmem>>, %arg6: memref<128x128xbf16, #tpu.memory_space<vmem>>, %arg7: memref<1x128xf32, #tpu.memory_space<vmem>>, %arg8: memref<8x128xf32, #tpu.memory_space<vmem>>) attributes {dimension_semantics = [#tpu.dimension_semantics<parallel>], iteration_bounds = array<i64: 1>, scalar_prefetch = 0 : i64, scratch_operands = 0 : i64, tpu.core_type = #tpu.core_type<tc>, window_params = [{transform_indices = @transform_0, window_bounds = array<i64: 8, 128>}, {pipeline_mode = #tpu.pipeline_mode<synchronous>, transform_indices = @transform_1, window_bounds = array<i64: 128, 256>}, {pipeline_mode = #tpu.pipeline_mode<synchronous>, transform_indices = @transform_2, window_bounds = array<i64: 1, 256>}, {pipeline_mode = #tpu.pipeline_mode<synchronous>, transform_indices = @transform_3, window_bounds = array<i64: 256, 128>}, {pipeline_mode = #tpu.pipeline_mode<synchronous>, transform_indices = @transform_4, window_bounds = array<i64: 1, 128>}, {pipeline_mode = #tpu.pipeline_mode<synchronous>, transform_indices = @transform_5, window_bounds = array<i64: 128, 128>}, {pipeline_mode = #tpu.pipeline_mode<synchronous>, transform_indices = @transform_6, window_bounds = array<i64: 1, 128>}, {transform_indices = @transform_7, window_bounds = array<i64: 8, 128>}]} {
    %c0 = arith.constant 0 : index
    %c0_0 = arith.constant 0 : index
    %0 = vector.load %arg1[%c0, %c0_0] : memref<8x128xf32, #tpu.memory_space<vmem>>, vector<8x128xf32>
    %1 = arith.truncf %0 : vector<8x128xf32> to vector<8x128xbf16>
    %c0_1 = arith.constant 0 : index
    %c0_2 = arith.constant 0 : index
    %2 = vector.load %arg2[%c0_1, %c0_2] : memref<128x256xbf16, #tpu.memory_space<vmem>>, vector<128x256xbf16>
    %cst = arith.constant dense<0.000000e+00> : vector<8x256xf32>
    %3 = tpu.matmul %1, %2, %cst {dimension_numbers = #tpu.dot_dimension_numbers<[1], [0], [0], [1], [0, 0, 1, 1], [], []>} : vector<8x128xbf16>, vector<128x256xbf16>, vector<8x256xf32> -> vector<8x256xf32>
    %c0_3 = arith.constant 0 : index
    %c0_4 = arith.constant 0 : index
    %4 = vector.load %arg3[%c0_3, %c0_4] : memref<1x256xf32, #tpu.memory_space<vmem>>, vector<1x256xf32>
    %5 = vector.broadcast %4 : vector<1x256xf32> to vector<8x256xf32>
    %6 = arith.addf %3, %5 : vector<8x256xf32>
    %cst_5 = arith.constant 0.000000e+00 : f32
    %7 = vector.broadcast %cst_5 : f32 to vector<8x256xf32>
    %8 = arith.maximumf %6, %7 : vector<8x256xf32>
    %9 = arith.truncf %8 : vector<8x256xf32> to vector<8x256xbf16>
    %c0_6 = arith.constant 0 : index
    %c0_7 = arith.constant 0 : index
    %10 = vector.load %arg4[%c0_6, %c0_7] : memref<256x128xbf16, #tpu.memory_space<vmem>>, vector<256x128xbf16>
    %cst_8 = arith.constant dense<0.000000e+00> : vector<8x128xf32>
    %11 = tpu.matmul %9, %10, %cst_8 {dimension_numbers = #tpu.dot_dimension_numbers<[1], [0], [0], [1], [0, 0, 1, 1], [], []>} : vector<8x256xbf16>, vector<256x128xbf16>, vector<8x128xf32> -> vector<8x128xf32>
    %c0_9 = arith.constant 0 : index
    %c0_10 = arith.constant 0 : index
    %12 = vector.load %arg5[%c0_9, %c0_10] : memref<1x128xf32, #tpu.memory_space<vmem>>, vector<1x128xf32>
    %13 = vector.broadcast %12 : vector<1x128xf32> to vector<8x128xf32>
    %14 = arith.addf %11, %13 : vector<8x128xf32>
    %cst_11 = arith.constant 0.000000e+00 : f32
    %15 = vector.broadcast %cst_11 : f32 to vector<8x128xf32>
    %16 = arith.maximumf %14, %15 : vector<8x128xf32>
    %17 = arith.truncf %16 : vector<8x128xf32> to vector<8x128xbf16>
    %c0_12 = arith.constant 0 : index
    %c0_13 = arith.constant 0 : index
    %18 = vector.load %arg6[%c0_12, %c0_13] : memref<128x128xbf16, #tpu.memory_space<vmem>>, vector<128x128xbf16>
    %cst_14 = arith.constant dense<0.000000e+00> : vector<8x128xf32>
    %19 = tpu.matmul %17, %18, %cst_14 {dimension_numbers = #tpu.dot_dimension_numbers<[1], [0], [0], [1], [0, 0, 1, 1], [], []>} : vector<8x128xbf16>, vector<128x128xbf16>, vector<8x128xf32> -> vector<8x128xf32>
    %c0_15 = arith.constant 0 : index
    %c0_16 = arith.constant 0 : index
    %20 = vector.load %arg7[%c0_15, %c0_16] : memref<1x128xf32, #tpu.memory_space<vmem>>, vector<1x128xf32>
    %21 = vector.broadcast %20 : vector<1x128xf32> to vector<8x128xf32>
    %22 = arith.addf %19, %21 : vector<8x128xf32>
    %cst_17 = arith.constant -1.000000e+00 : f32
    %cst_18 = arith.constant 1.000000e+00 : f32
    %23 = vector.broadcast %cst_17 : f32 to vector<8x128xf32>
    %24 = arith.maximumf %23, %22 : vector<8x128xf32>
    %25 = vector.broadcast %cst_18 : f32 to vector<8x128xf32>
    %26 = arith.minimumf %25, %24 : vector<8x128xf32>
    %c0_19 = arith.constant 0 : index
    %c0_20 = arith.constant 0 : index
    %27 = vector.load %arg8[%c0_19, %c0_20] : memref<8x128xf32, #tpu.memory_space<vmem>>, vector<8x128xf32>
    tpu.vector_store %arg8[%c0_19, %c0_20], %26 {strides = array<i32>} : memref<8x128xf32, #tpu.memory_space<vmem>>, vector<8x128xf32>,
    return
  }
  func.func @transform_0(%arg0: i32) -> (i32, i32) {
    %c0_i32 = arith.constant 0 : i32
    %c0_i32_0 = arith.constant 0 : i32
    return %arg0, %c0_i32 : i32, i32
  }
  func.func @transform_1(%arg0: i32) -> (i32, i32) {
    %c0_i32 = arith.constant 0 : i32
    %c0_i32_0 = arith.constant 0 : i32
    %c0_i32_1 = arith.constant 0 : i32
    return %c0_i32, %c0_i32_0 : i32, i32
  }
  func.func @transform_2(%arg0: i32) -> (i32, i32) {
    %c0_i32 = arith.constant 0 : i32
    %c0_i32_0 = arith.constant 0 : i32
    %c0_i32_1 = arith.constant 0 : i32
    return %c0_i32, %c0_i32_0 : i32, i32
  }
  func.func @transform_3(%arg0: i32) -> (i32, i32) {
    %c0_i32 = arith.constant 0 : i32
    %c0_i32_0 = arith.constant 0 : i32
    %c0_i32_1 = arith.constant 0 : i32
    return %c0_i32, %c0_i32_0 : i32, i32
  }
  func.func @transform_4(%arg0: i32) -> (i32, i32) {
    %c0_i32 = arith.constant 0 : i32
    %c0_i32_0 = arith.constant 0 : i32
    %c0_i32_1 = arith.constant 0 : i32
    return %c0_i32, %c0_i32_0 : i32, i32
  }
  func.func @transform_5(%arg0: i32) -> (i32, i32) {
    %c0_i32 = arith.constant 0 : i32
    %c0_i32_0 = arith.constant 0 : i32
    %c0_i32_1 = arith.constant 0 : i32
    return %c0_i32, %c0_i32_0 : i32, i32
  }
  func.func @transform_6(%arg0: i32) -> (i32, i32) {
    %c0_i32 = arith.constant 0 : i32
    %c0_i32_0 = arith.constant 0 : i32
    %c0_i32_1 = arith.constant 0 : i32
    return %c0_i32, %c0_i32_0 : i32, i32
  }
  func.func @transform_7(%arg0: i32) -> (i32, i32) {
    %c0_i32 = arith.constant 0 : i32
    %c0_i32_0 = arith.constant 0 : i32
    return %arg0, %c0_i32 : i32, i32
  }
}

</mosaic_0001>

<llo_original>
// kernel: tpu_custom_call.1
$region0: #{tpu_custom_call.1}
  #allocation0 [shape = 'u32[]', space=smem, size = 0x4, offset = 0x4, fixed_abs, tag = 'smem constant byte address 0x4 - core index']
  #allocation1 [shape = 'u32[144,128]{1,0:T(1,128)}', space=vmem, size = 0x12000, scoped, tag = 'internal scratch']
  %s0 = inlined_call_operand.hbm [shape: f32[8,128], index: 0, kind: input, shape index: {}]
  %s1 = inlined_call_operand.hbm [shape: bf16[128,256], index: 1, kind: input, shape index: {}]
  %s2 = inlined_call_operand.vmem [shape: f32[1,256], index: 2, kind: input, shape index: {}]
  %s3 = inlined_call_operand.hbm [shape: bf16[256,128], index: 3, kind: input, shape index: {}]
  %s4 = inlined_call_operand.vmem [shape: f32[1,128], index: 4, kind: input, shape index: {}]
  %s5 = inlined_call_operand.hbm [shape: bf16[128,128], index: 5, kind: input, shape index: {}]
  %s6 = inlined_call_operand.vmem [shape: f32[1,128], index: 6, kind: input, shape index: {}]
  %s7 = inlined_call_operand.hbm [shape: f32[8,128], index: 7, kind: output, shape index: {}]
  %s8 = sld [smem:[#allocation0]]
  $region54: #{tpu_custom_call.1} parent=0
    _
  %s10 = ssub.s32 1, %s8
  %s11 = scalar_select 0, %s10, %s8
  $region1: #{tpu_custom_call.1} parent=0
    #allocation2 [shape = 'u8[4096]{0}', space=vmem, size = 0x1000, scoped, tag = 'input window, operand 0, single buffered']
    #allocation3 [shape = 's32[1]{0}', space=sflag, size = 0x4, scoped, tag = 'scoped memory for tpu_custom_call.1']
    #allocation4 [shape = 's32[1]{0}', space=sflag, size = 0x4, scoped, tag = 'scoped memory for tpu_custom_call.1']
    #allocation5 [shape = 'u8[65536]{0}', space=vmem, size = 0x10000, scoped, tag = 'input window, operand 1, single buffered']
    #allocation6 [shape = 's32[1]{0}', space=sflag, size = 0x4, scoped, tag = 'scoped memory for tpu_custom_call.1']
    #allocation7 [shape = 'u8[65536]{0}', space=vmem, size = 0x10000, scoped, tag = 'input window, operand 3, single buffered']
    #allocation8 [shape = 'u8[32768]{0}', space=vmem, size = 0x8000, scoped, tag = 'input window, operand 5, single buffered']
    #allocation9 [shape = 's32[1]{0}', space=sflag, size = 0x4, scoped, tag = 'scoped memory for tpu_custom_call.1']
    #allocation10 [shape = 'u8[4096]{0}', space=vmem, size = 0x1000, scoped, tag = 'output window, operand 0, single buffered']
    %12 = vsyncpa [#allocation3], 0
    %13 = vsyncpa [#allocation6], 0
    %14 = vsyncpa [#allocation9], 0
    %15 = vsyncpa [#allocation4], 0
    // Predicated region
    $region2: #{tpu_custom_call.1} parent=1 // pred_check
      _
    $region3: #{tpu_custom_call.1} parent=1 // pred_check_branch
      %17 = sbr.rel (0) target = $region5
    $region4: #{tpu_custom_call.1} parent=1 // pred_region
      %s19 = ssub.s32 128, 128
      %20 = vsyncadd [#allocation3], %s19
      %s22 = sshll.u32 [#allocation2], 4
      %s23 = int_to_ptr.vmem [resolvable:$true] %s22
      %25 = dma.hbm_to_vmem [thread:$0]  %s0, 128, %s23, [#allocation3]
    $region5: #{tpu_custom_call.1} parent=1 // pred_fallthru
      _
    // Predicated region
    $region6: #{tpu_custom_call.1} parent=1 // pred_check
      _
    $region7: #{tpu_custom_call.1} parent=1 // pred_check_branch
      %27 = sbr.rel (0) target = $region9
    $region8: #{tpu_custom_call.1} parent=1 // pred_region
      %s29 = ssub.s32 2048, 2048
      %30 = vsyncadd [#allocation6], %s29
      %s31 = sshll.u32 [#allocation5], 4
      %s32 = int_to_ptr.vmem [resolvable:$true] %s31
      %37 = dma.hbm_to_vmem [thread:$0]  %s1, 2048, %s32, [#allocation6], 128, 128, 8
    $region9: #{tpu_custom_call.1} parent=1 // pred_fallthru
      _
    // Predicated region
    $region10: #{tpu_custom_call.1} parent=1 // pred_check
      _
    $region11: #{tpu_custom_call.1} parent=1 // pred_check_branch
      %39 = sbr.rel (0) target = $region13
    $region12: #{tpu_custom_call.1} parent=1 // pred_region
      _
    $region13: #{tpu_custom_call.1} parent=1 // pred_fallthru
      _
    // Predicated region
    $region14: #{tpu_custom_call.1} parent=1 // pred_check
      _
    $region15: #{tpu_custom_call.1} parent=1 // pred_check_branch
      %41 = sbr.rel (0) target = $region17
    $region16: #{tpu_custom_call.1} parent=1 // pred_region
      %s43 = ssub.s32 2048, 2048
      %44 = vsyncadd [#allocation6], %s43
      %s45 = sshll.u32 [#allocation7], 4
      %s46 = int_to_ptr.vmem [resolvable:$true] %s45
      %51 = dma.hbm_to_vmem [thread:$0]  %s3, 2048, %s46, [#allocation6], 64, 64, 4
    $region17: #{tpu_custom_call.1} parent=1 // pred_fallthru
      _
    // Predicated region
    $region18: #{tpu_custom_call.1} parent=1 // pred_check
      _
    $region19: #{tpu_custom_call.1} parent=1 // pred_check_branch
      %53 = sbr.rel (0) target = $region21
    $region20: #{tpu_custom_call.1} parent=1 // pred_region
      _
    $region21: #{tpu_custom_call.1} parent=1 // pred_fallthru
      _
    // Predicated region
    $region22: #{tpu_custom_call.1} parent=1 // pred_check
      _
    $region23: #{tpu_custom_call.1} parent=1 // pred_check_branch
      %55 = sbr.rel (0) target = $region25
    $region24: #{tpu_custom_call.1} parent=1 // pred_region
      %s57 = ssub.s32 1024, 1024
      %58 = vsyncadd [#allocation9], %s57
      %s59 = sshll.u32 [#allocation8], 4
      %s60 = int_to_ptr.vmem [resolvable:$true] %s59
      %65 = dma.hbm_to_vmem [thread:$0]  %s5, 1024, %s60, [#allocation9], 64, 64, 4
    $region25: #{tpu_custom_call.1} parent=1 // pred_fallthru
      _
    // Predicated region
    $region26: #{tpu_custom_call.1} parent=1 // pred_check
      _
    $region27: #{tpu_custom_call.1} parent=1 // pred_check_branch
      %67 = sbr.rel (0) target = $region29
    $region28: #{tpu_custom_call.1} parent=1 // pred_region
      _
    $region29: #{tpu_custom_call.1} parent=1 // pred_fallthru
      _
    // Predicated region
    $region30: #{tpu_custom_call.1} parent=1 // pred_check
      _
    $region31: #{tpu_custom_call.1} parent=1 // pred_check_branch
      %69 = sbr.rel (0) target = $region33
    $region32: #{tpu_custom_call.1} parent=1 // pred_region
      %70 = dma.done [#allocation3], 128
    $region33: #{tpu_custom_call.1} parent=1 // pred_fallthru
      _
    // Predicated region
    $region34: #{tpu_custom_call.1} parent=1 // pred_check
      _
    $region35: #{tpu_custom_call.1} parent=1 // pred_check_branch
      %72 = sbr.rel (0) target = $region37
    $region36: #{tpu_custom_call.1} parent=1 // pred_region
      %73 = dma.done [#allocation6], 2048
    $region37: #{tpu_custom_call.1} parent=1 // pred_fallthru
      _
    // Predicated region
    $region38: #{tpu_custom_call.1} parent=1 // pred_check
      _
    $region39: #{tpu_custom_call.1} parent=1 // pred_check_branch
      %75 = sbr.rel (0) target = $region41
    $region40: #{tpu_custom_call.1} parent=1 // pred_region
      %76 = dma.done [#allocation6], 2048
    $region41: #{tpu_custom_call.1} parent=1 // pred_fallthru
      _
    // Predicated region
    $region42: #{tpu_custom_call.1} parent=1 // pred_check
      _
    $region43: #{tpu_custom_call.1} parent=1 // pred_check_branch
      %78 = sbr.rel (0) target = $region45
    $region44: #{tpu_custom_call.1} parent=1 // pred_region
      %79 = dma.done [#allocation9], 1024
    $region45: #{tpu_custom_call.1} parent=1 // pred_fallthru
      _
    %v81 = vld [vmem:[#allocation2] sm:$0xff]
    %v82 = vpack.c.bf16 %v81, %v81
    %v83 = vld [vmem:[#allocation5] sm:$0xff]
    %v84 = vld [vmem:[#allocation5 + $0x8] sm:$0xff]
    %v85 = vld [vmem:[#allocation5 + $0x10] sm:$0xff]
    %v86 = vld [vmem:[#allocation5 + $0x18] sm:$0xff]
    %v87 = vld [vmem:[#allocation5 + $0x20] sm:$0xff]
    %v88 = vld [vmem:[#allocation5 + $0x28] sm:$0xff]
    %v89 = vld [vmem:[#allocation5 + $0x30] sm:$0xff]
    %v90 = vld [vmem:[#allocation5 + $0x38] sm:$0xff]
    %v91 = vld [vmem:[#allocation5 + $0x40] sm:$0xff]
    %v92 = vld [vmem:[#allocation5 + $0x48] sm:$0xff]
    %v93 = vld [vmem:[#allocation5 + $0x50] sm:$0xff]
    %v94 = vld [vmem:[#allocation5 + $0x58] sm:$0xff]
    %v95 = vld [vmem:[#allocation5 + $0x60] sm:$0xff]
    %v96 = vld [vmem:[#allocation5 + $0x68] sm:$0xff]
    %v97 = vld [vmem:[#allocation5 + $0x70] sm:$0xff]
    %v98 = vld [vmem:[#allocation5 + $0x78] sm:$0xff]
    %v99 = vld [vmem:[%s2] sm:$0x3]
    %v101 = vlaneseq
    %v102 = vshrl.u32 %v101, 7
    %v103 = vsub.s32 0, %v102
    %v104 = vrot.slane %v99, %v103
    %v105 = vlaneseq
    %v106 = vshrl.u32 %v105, 7
    %v107 = vsub.s32 1, %v106
    %v108 = vrot.slane %v99, %v107
    %v127 = vunpack.c.l.b16 %v83
    %v128 = vunpack.c.h.b16 %v83
    %v129 = vunpack.c.l.b16 %v84
    %v130 = vunpack.c.h.b16 %v84
    %v131 = vunpack.c.l.b16 %v85
    %v132 = vunpack.c.h.b16 %v85
    %v133 = vunpack.c.l.b16 %v86
    %v134 = vunpack.c.h.b16 %v86
    %v135 = vunpack.c.l.b16 %v87
    %v136 = vunpack.c.h.b16 %v87
    %v137 = vunpack.c.l.b16 %v88
    %v138 = vunpack.c.h.b16 %v88
    %v139 = vunpack.c.l.b16 %v89
    %v140 = vunpack.c.h.b16 %v89
    %v141 = vunpack.c.l.b16 %v90
    %v142 = vunpack.c.h.b16 %v90
    %v143 = vunpack.c.l.b16 %v91
    %v144 = vunpack.c.h.b16 %v91
    %v145 = vunpack.c.l.b16 %v92
    %v146 = vunpack.c.h.b16 %v92
    %v147 = vunpack.c.l.b16 %v93
    %v148 = vunpack.c.h.b16 %v93
    %v149 = vunpack.c.l.b16 %v94
    %v150 = vunpack.c.h.b16 %v94
    %v151 = vunpack.c.l.b16 %v95
    %v152 = vunpack.c.h.b16 %v95
    %v153 = vunpack.c.l.b16 %v96
    %v154 = vunpack.c.h.b16 %v96
    %v155 = vunpack.c.l.b16 %v97
    %v156 = vunpack.c.h.b16 %v97
    %v157 = vunpack.c.l.b16 %v98
    %v158 = vunpack.c.h.b16 %v98
    %v159 = vpack.c.b16 %v129, %v127
    %v160 = vpack.c.b16 %v130, %v128
    %v161 = vpack.c.b16 %v133, %v131
    %v162 = vpack.c.b16 %v134, %v132
    %v163 = vpack.c.b16 %v137, %v135
    %v164 = vpack.c.b16 %v138, %v136
    %v165 = vpack.c.b16 %v141, %v139
    %v166 = vpack.c.b16 %v142, %v140
    %v167 = vpack.c.b16 %v145, %v143
    %v168 = vpack.c.b16 %v146, %v144
    %v169 = vpack.c.b16 %v149, %v147
    %v170 = vpack.c.b16 %v150, %v148
    %v171 = vpack.c.b16 %v153, %v151
    %v172 = vpack.c.b16 %v154, %v152
    %v173 = vpack.c.b16 %v157, %v155
    %v174 = vpack.c.b16 %v158, %v156
    %191 = vmatprep.subr.bf16.mxu0 %v160
    %192 = vmatpush1.bf16.msra.mxu0 %v159
    %193 = vmatprep.subr.bf16.mxu0 %v162
    %194 = vmatpush1.bf16.msra.mxu0 %v161
    %195 = vmatprep.subr.bf16.mxu0 %v164
    %196 = vmatpush1.bf16.msra.mxu0 %v163
    %197 = vmatprep.subr.bf16.mxu0 %v166
    %198 = vmatpush1.bf16.msra.mxu0 %v165
    %199 = vmatprep.subr.bf16.mxu0 %v168
    %200 = vmatpush1.bf16.msra.mxu0 %v167
    %201 = vmatprep.subr.bf16.mxu0 %v170
    %202 = vmatpush1.bf16.msra.mxu0 %v169
    %203 = vmatprep.subr.bf16.mxu0 %v172
    %204 = vmatpush1.bf16.msra.mxu0 %v171
    %205 = vmatprep.subr.bf16.mxu0 %v174
    %206 = vmatpush1.bf16.msra.mxu0 %v173
    %207 = vmatprep.subr.bf16.mxu0 0
    %208 = vmatpush1.bf16.msra.mxu0 0
    %209 = vmatprep.subr.bf16.mxu0 0
    %210 = vmatpush1.bf16.msra.mxu0 0
    %211 = vmatprep.subr.bf16.mxu0 0
    %212 = vmatpush1.bf16.msra.mxu0 0
    %213 = vmatprep.subr.bf16.mxu0 0
    %214 = vmatpush1.bf16.msra.mxu0 0
    %215 = vmatprep.subr.bf16.mxu0 0
    %216 = vmatpush1.bf16.msra.mxu0 0
    %217 = vmatprep.subr.bf16.mxu0 0
    %218 = vmatpush1.bf16.msra.mxu0 0
    %219 = vmatprep.subr.bf16.mxu0 0
    %220 = vmatpush1.bf16.msra.mxu0 0
    %221 = vmatprep.subr.bf16.mxu0 0
    %222 = vmatpush1.bf16.msra.mxu0 0
    %223 = vmatprep.mubr.bf16.mxu0 0
    %224 = vmatmul.mubr.bf16.gmra.mrb[0].mxu0 %v82
    %v225 = vpop.f32.mrb[0].mxu0
    %v226 = vadd.f32 %v104, %v225
    %v227 = vpop.f32.mrb[0].mxu0
    %v228 = vadd.f32 %v108, %v227
    %v229 = vpop.f32.mrb[0].mxu0
    %v230 = vpop.f32.mrb[0].mxu0
    %231 = vdwg.mxu0
    %v232 = vmax.f32 %v226, 0.0
    %v233 = vmax.f32 %v228, 0.0
    %v234 = vpack.c.bf16 %v232, %v232
    %v235 = vpack.c.bf16 %v233, %v233
    %v236 = vld [vmem:[#allocation7] sm:$0xf]
    %v237 = vld [vmem:[#allocation7 + $0x4] sm:$0xf]
    %v238 = vld [vmem:[#allocation7 + $0x8] sm:$0xf]
    %v239 = vld [vmem:[#allocation7 + $0xc] sm:$0xf]
    %v240 = vld [vmem:[#allocation7 + $0x10] sm:$0xf]
    %v241 = vld [vmem:[#allocation7 + $0x14] sm:$0xf]
    %v242 = vld [vmem:[#allocation7 + $0x18] sm:$0xf]
    %v243 = vld [vmem:[#allocation7 + $0x1c] sm:$0xf]
    %v244 = vld [vmem:[#allocation7 + $0x20] sm:$0xf]
    %v245 = vld [vmem:[#allocation7 + $0x24] sm:$0xf]
    %v246 = vld [vmem:[#allocation7 + $0x28] sm:$0xf]
    %v247 = vld [vmem:[#allocation7 + $0x2c] sm:$0xf]
    %v248 = vld [vmem:[#allocation7 + $0x30] sm:$0xf]
    %v249 = vld [vmem:[#allocation7 + $0x34] sm:$0xf]
    %v250 = vld [vmem:[#allocation7 + $0x38] sm:$0xf]
    %v251 = vld [vmem:[#allocation7 + $0x3c] sm:$0xf]
    %v252 = vld [vmem:[#allocation7 + $0x40] sm:$0xf]
    %v253 = vld [vmem:[#allocation7 + $0x44] sm:$0xf]
    %v254 = vld [vmem:[#allocation7 + $0x48] sm:$0xf]
    %v255 = vld [vmem:[#allocation7 + $0x4c] sm:$0xf]
    %v256 = vld [vmem:[#allocation7 + $0x50] sm:$0xf]
    %v257 = vld [vmem:[#allocation7 + $0x54] sm:$0xf]
    %v258 = vld [vmem:[#allocation7 + $0x58] sm:$0xf]
    %v259 = vld [vmem:[#allocation7 + $0x5c] sm:$0xf]
    %v260 = vld [vmem:[#allocation7 + $0x60] sm:$0xf]
    %v261 = vld [vmem:[#allocation7 + $0x64] sm:$0xf]
    %v262 = vld [vmem:[#allocation7 + $0x68] sm:$0xf]
    %v263 = vld [vmem:[#allocation7 + $0x6c] sm:$0xf]
    %v264 = vld [vmem:[#allocation7 + $0x70] sm:$0xf]
    %v265 = vld [vmem:[#allocation7 + $0x74] sm:$0xf]
    %v266 = vld [vmem:[#allocation7 + $0x78] sm:$0xf]
    %v267 = vld [vmem:[#allocation7 + $0x7c] sm:$0xf]
    %v268 = vld [vmem:[%s4] sm:$0x1]
    %v270 = vlaneseq
    %v271 = vshrl.u32 %v270, 7
    %v272 = vsub.s32 0, %v271
    %v273 = vrot.slane %v268, %v272
    %v307 = vunpack.c.l.b16 %v236
    %v308 = vunpack.c.l.b16 %v237
    %v309 = vunpack.c.l.b16 %v238
    %v310 = vunpack.c.l.b16 %v239
    %v311 = vunpack.c.l.b16 %v240
    %v312 = vunpack.c.l.b16 %v241
    %v313 = vunpack.c.l.b16 %v242
    %v314 = vunpack.c.l.b16 %v243
    %v315 = vunpack.c.l.b16 %v244
    %v316 = vunpack.c.l.b16 %v245
    %v317 = vunpack.c.l.b16 %v246
    %v318 = vunpack.c.l.b16 %v247
    %v319 = vunpack.c.l.b16 %v248
    %v320 = vunpack.c.l.b16 %v249
    %v321 = vunpack.c.l.b16 %v250
    %v322 = vunpack.c.l.b16 %v251
    %v323 = vunpack.c.l.b16 %v252
    %v324 = vunpack.c.l.b16 %v253
    %v325 = vunpack.c.l.b16 %v254
    %v326 = vunpack.c.l.b16 %v255
    %v327 = vunpack.c.l.b16 %v256
    %v328 = vunpack.c.l.b16 %v257
    %v329 = vunpack.c.l.b16 %v258
    %v330 = vunpack.c.l.b16 %v259
    %v331 = vunpack.c.l.b16 %v260
    %v332 = vunpack.c.l.b16 %v261
    %v333 = vunpack.c.l.b16 %v262
    %v334 = vunpack.c.l.b16 %v263
    %v335 = vunpack.c.l.b16 %v264
    %v336 = vunpack.c.l.b16 %v265
    %v337 = vunpack.c.l.b16 %v266
    %v338 = vunpack.c.l.b16 %v267
    %v339 = vpack.c.b16 %v308, %v307
    %v340 = vpack.c.b16 %v310, %v309
    %v341 = vpack.c.b16 %v312, %v311
    %v342 = vpack.c.b16 %v314, %v313
    %v343 = vpack.c.b16 %v316, %v315
    %v344 = vpack.c.b16 %v318, %v317
    %v345 = vpack.c.b16 %v320, %v319
    %v346 = vpack.c.b16 %v322, %v321
    %v347 = vpack.c.b16 %v324, %v323
    %v348 = vpack.c.b16 %v326, %v325
    %v349 = vpack.c.b16 %v328, %v327
    %v350 = vpack.c.b16 %v330, %v329
    %v351 = vpack.c.b16 %v332, %v331
    %v352 = vpack.c.b16 %v334, %v333
    %v353 = vpack.c.b16 %v336, %v335
    %v354 = vpack.c.b16 %v338, %v337
    %371 = vmatprep.subr.bf16.mxu0 0
    %372 = vmatpush1.bf16.msra.mxu0 %v339
    %373 = vmatprep.subr.bf16.mxu0 0
    %374 = vmatpush1.bf16.msra.mxu0 %v340
    %375 = vmatprep.subr.bf16.mxu0 0
    %376 = vmatpush1.bf16.msra.mxu0 %v341
    %377 = vmatprep.subr.bf16.mxu0 0
    %378 = vmatpush1.bf16.msra.mxu0 %v342
    %379 = vmatprep.subr.bf16.mxu0 0
    %380 = vmatpush1.bf16.msra.mxu0 %v343
    %381 = vmatprep.subr.bf16.mxu0 0
    %382 = vmatpush1.bf16.msra.mxu0 %v344
    %383 = vmatprep.subr.bf16.mxu0 0
    %384 = vmatpush1.bf16.msra.mxu0 %v345
    %385 = vmatprep.subr.bf16.mxu0 0
    %386 = vmatpush1.bf16.msra.mxu0 %v346
    %387 = vmatprep.subr.bf16.mxu0 0
    %388 = vmatpush1.bf16.msra.mxu0 %v347
    %389 = vmatprep.subr.bf16.mxu0 0
    %390 = vmatpush1.bf16.msra.mxu0 %v348
    %391 = vmatprep.subr.bf16.mxu0 0
    %392 = vmatpush1.bf16.msra.mxu0 %v349
    %393 = vmatprep.subr.bf16.mxu0 0
    %394 = vmatpush1.bf16.msra.mxu0 %v350
    %395 = vmatprep.subr.bf16.mxu0 0
    %396 = vmatpush1.bf16.msra.mxu0 %v351
    %397 = vmatprep.subr.bf16.mxu0 0
    %398 = vmatpush1.bf16.msra.mxu0 %v352
    %399 = vmatprep.subr.bf16.mxu0 0
    %400 = vmatpush1.bf16.msra.mxu0 %v353
    %401 = vmatprep.subr.bf16.mxu0 0
    %402 = vmatpush1.bf16.msra.mxu0 %v354
    %403 = vmatprep.mubr.bf16.mxu0 %v235
    %404 = vmatmul.mubr.bf16.gmra.mrb[0].mxu0 %v234
    %v405 = vpop.f32.mrb[0].mxu0
    %v406 = vadd.f32 %v273, %v405
    %v407 = vpop.f32.mrb[0].mxu0
    %v408 = vpop.f32.mrb[0].mxu0
    %v409 = vpop.f32.mrb[0].mxu0
    %410 = vdwg.mxu0
    %v411 = vmax.f32 %v406, 0.0
    %v412 = vpack.c.bf16 %v411, %v411
    %v413 = vld [vmem:[#allocation8] sm:$0xf]
    %v414 = vld [vmem:[#allocation8 + $0x4] sm:$0xf]
    %v415 = vld [vmem:[#allocation8 + $0x8] sm:$0xf]
    %v416 = vld [vmem:[#allocation8 + $0xc] sm:$0xf]
    %v417 = vld [vmem:[#allocation8 + $0x10] sm:$0xf]
    %v418 = vld [vmem:[#allocation8 + $0x14] sm:$0xf]
    %v419 = vld [vmem:[#allocation8 + $0x18] sm:$0xf]
    %v420 = vld [vmem:[#allocation8 + $0x1c] sm:$0xf]
    %v421 = vld [vmem:[#allocation8 + $0x20] sm:$0xf]
    %v422 = vld [vmem:[#allocation8 + $0x24] sm:$0xf]
    %v423 = vld [vmem:[#allocation8 + $0x28] sm:$0xf]
    %v424 = vld [vmem:[#allocation8 + $0x2c] sm:$0xf]
    %v425 = vld [vmem:[#allocation8 + $0x30] sm:$0xf]
    %v426 = vld [vmem:[#allocation8 + $0x34] sm:$0xf]
    %v427 = vld [vmem:[#allocation8 + $0x38] sm:$0xf]
    %v428 = vld [vmem:[#allocation8 + $0x3c] sm:$0xf]
    %v429 = vld [vmem:[%s6] sm:$0x1]
    %v431 = vlaneseq
    %v432 = vshrl.u32 %v431, 7
    %v433 = vsub.s32 0, %v432
    %v434 = vrot.slane %v429, %v433
    %v452 = vunpack.c.l.b16 %v413
    %v453 = vunpack.c.l.b16 %v414
    %v454 = vunpack.c.l.b16 %v415
    %v455 = vunpack.c.l.b16 %v416
    %v456 = vunpack.c.l.b16 %v417
    %v457 = vunpack.c.l.b16 %v418
    %v458 = vunpack.c.l.b16 %v419
    %v459 = vunpack.c.l.b16 %v420
    %v460 = vunpack.c.l.b16 %v421
    %v461 = vunpack.c.l.b16 %v422
    %v462 = vunpack.c.l.b16 %v423
    %v463 = vunpack.c.l.b16 %v424
    %v464 = vunpack.c.l.b16 %v425
    %v465 = vunpack.c.l.b16 %v426
    %v466 = vunpack.c.l.b16 %v427
    %v467 = vunpack.c.l.b16 %v428
    %v468 = vpack.c.b16 %v453, %v452
    %v469 = vpack.c.b16 %v455, %v454
    %v470 = vpack.c.b16 %v457, %v456
    %v471 = vpack.c.b16 %v459, %v458
    %v472 = vpack.c.b16 %v461, %v460
    %v473 = vpack.c.b16 %v463, %v462
    %v474 = vpack.c.b16 %v465, %v464
    %v475 = vpack.c.b16 %v467, %v466
    %484 = vmatprep.subr.bf16.mxu0 0
    %485 = vmatpush1.bf16.msra.mxu0 %v468
    %486 = vmatprep.subr.bf16.mxu0 0
    %487 = vmatpush1.bf16.msra.mxu0 %v469
    %488 = vmatprep.subr.bf16.mxu0 0
    %489 = vmatpush1.bf16.msra.mxu0 %v470
    %490 = vmatprep.subr.bf16.mxu0 0
    %491 = vmatpush1.bf16.msra.mxu0 %v471
    %492 = vmatprep.subr.bf16.mxu0 0
    %493 = vmatpush1.bf16.msra.mxu0 %v472
    %494 = vmatprep.subr.bf16.mxu0 0
    %495 = vmatpush1.bf16.msra.mxu0 %v473
    %496 = vmatprep.subr.bf16.mxu0 0
    %497 = vmatpush1.bf16.msra.mxu0 %v474
    %498 = vmatprep.subr.bf16.mxu0 0
    %499 = vmatpush1.bf16.msra.mxu0 %v475
    %500 = vmatprep.subr.bf16.mxu0 0
    %501 = vmatpush1.bf16.msra.mxu0 0
    %502 = vmatprep.subr.bf16.mxu0 0
    %503 = vmatpush1.bf16.msra.mxu0 0
    %504 = vmatprep.subr.bf16.mxu0 0
    %505 = vmatpush1.bf16.msra.mxu0 0
    %506 = vmatprep.subr.bf16.mxu0 0
    %507 = vmatpush1.bf16.msra.mxu0 0
    %508 = vmatprep.subr.bf16.mxu0 0
    %509 = vmatpush1.bf16.msra.mxu0 0
    %510 = vmatprep.subr.bf16.mxu0 0
    %511 = vmatpush1.bf16.msra.mxu0 0
    %512 = vmatprep.subr.bf16.mxu0 0
    %513 = vmatpush1.bf16.msra.mxu0 0
    %514 = vmatprep.subr.bf16.mxu0 0
    %515 = vmatpush1.bf16.msra.mxu0 0
    %516 = vmatprep.mubr.bf16.mxu0 0
    %517 = vmatmul.mubr.bf16.gmra.mrb[0].mxu0 %v412
    %v518 = vpop.f32.mrb[0].mxu0
    %v519 = vadd.f32 %v434, %v518
    %v520 = vpop.f32.mrb[0].mxu0
    %v521 = vpop.f32.mrb[0].mxu0
    %v522 = vpop.f32.mrb[0].mxu0
    %523 = vdwg.mxu0
    %v524 = vmax.f32 %v519, -1.0
    %v525 = vmin.f32 %v524, 1.0
    %526 = vst [vmem:[#allocation10] sm:$0xff] %v525
    // Predicated region
    $region46: #{tpu_custom_call.1} parent=1 // pred_check
      _
    $region47: #{tpu_custom_call.1} parent=1 // pred_check_branch
      %528 = sbr.rel (0) target = $region49
    $region48: #{tpu_custom_call.1} parent=1 // pred_region
      %s530 = ssub.s32 128, 128
      %531 = vsyncadd [#allocation4], %s530
      %s533 = sshll.u32 [#allocation10], 4
      %s534 = int_to_ptr.vmem [resolvable:$true] %s533
      %536 = dma.vmem_to_hbm [thread:$0]  %s534, 128, %s7, [#allocation4]
    $region49: #{tpu_custom_call.1} parent=1 // pred_fallthru
      _
    // Predicated region
    $region50: #{tpu_custom_call.1} parent=1 // pred_check
      _
    $region51: #{tpu_custom_call.1} parent=1 // pred_check_branch
      %538 = sbr.rel (0) target = $region53
    $region52: #{tpu_custom_call.1} parent=1 // pred_region
      %539 = dma.done [#allocation4], 128
    $region53: #{tpu_custom_call.1} parent=1 // pred_fallthru
      _
    %540 = vsyncpa [#allocation3], 1
    %541 = vsyncpa [#allocation6], 1
    %542 = vsyncpa [#allocation9], 1
    %543 = vsyncpa [#allocation4], 1

// kernel: tpu_custom_call.1
$region0: #{tpu_custom_call.1}
  #allocation0 [shape = 'u32[]', space=smem, size = 0x4, offset = 0x4, fixed_abs, tag = 'smem constant byte address 0x4 - core index']
  #allocation1 [shape = 'u32[144,128]{1,0:T(1,128)}', space=vmem, size = 0x12000, scoped, tag = 'internal scratch']
  %s0 = inlined_call_operand.hbm [shape: f32[8,128], index: 0, kind: input, shape index: {}]
  %s1 = inlined_call_operand.hbm [shape: bf16[128,256], index: 1, kind: input, shape index: {}]
  %s2 = inlined_call_operand.vmem [shape: f32[1,256], index: 2, kind: input, shape index: {}]
  %s3 = inlined_call_operand.hbm [shape: bf16[256,128], index: 3, kind: input, shape index: {}]
  %s4 = inlined_call_operand.vmem [shape: f32[1,128], index: 4, kind: input, shape index: {}]
  %s5 = inlined_call_operand.hbm [shape: bf16[128,128], index: 5, kind: input, shape index: {}]
  %s6 = inlined_call_operand.vmem [shape: f32[1,128], index: 6, kind: input, shape index: {}]
  %s7 = inlined_call_operand.hbm [shape: f32[8,128], index: 7, kind: output, shape index: {}]
  %s8 = sld [smem:[#allocation0]]
  $region54: #{tpu_custom_call.1} parent=0
    _
  %s10 = ssub.s32 1, %s8
  %s11 = scalar_select 0, %s10, %s8
  $region1: #{tpu_custom_call.1} parent=0
    #allocation2 [shape = 'u8[4096]{0}', space=vmem, size = 0x1000, scoped, tag = 'input window, operand 0, single buffered']
    #allocation3 [shape = 's32[1]{0}', space=sflag, size = 0x4, scoped, tag = 'scoped memory for tpu_custom_call.1']
    #allocation4 [shape = 's32[1]{0}', space=sflag, size = 0x4, scoped, tag = 'scoped memory for tpu_custom_call.1']
    #allocation5 [shape = 'u8[65536]{0}', space=vmem, size = 0x10000, scoped, tag = 'input window, operand 1, single buffered']
    #allocation6 [shape = 's32[1]{0}', space=sflag, size = 0x4, scoped, tag = 'scoped memory for tpu_custom_call.1']
    #allocation7 [shape = 'u8[65536]{0}', space=vmem, size = 0x10000, scoped, tag = 'input window, operand 3, single buffered']
    #allocation8 [shape = 'u8[32768]{0}', space=vmem, size = 0x8000, scoped, tag = 'input window, operand 5, single buffered']
    #allocation9 [shape = 's32[1]{0}', space=sflag, size = 0x4, scoped, tag = 'scoped memory for tpu_custom_call.1']
    #allocation10 [shape = 'u8[4096]{0}', space=vmem, size = 0x1000, scoped, tag = 'output window, operand 0, single buffered']
    %12 = vsyncpa [#allocation3], 0
    %13 = vsyncpa [#allocation6], 0
    %14 = vsyncpa [#allocation9], 0
    %15 = vsyncpa [#allocation4], 0
    // Predicated region
    $region2: #{tpu_custom_call.1} parent=1 // pred_check
      _
    $region3: #{tpu_custom_call.1} parent=1 // pred_check_branch
      %17 = sbr.rel (0) target = $region5
    $region4: #{tpu_custom_call.1} parent=1 // pred_region
      %s19 = ssub.s32 128, 128
      %20 = vsyncadd [#allocation3], %s19
      %s22 = sshll.u32 [#allocation2], 4
      %s23 = int_to_ptr.vmem [resolvable:$true] %s22
      %25 = dma.hbm_to_vmem [thread:$0]  %s0, 128, %s23, [#allocation3]
    $region5: #{tpu_custom_call.1} parent=1 // pred_fallthru
      _
    // Predicated region
    $region6: #{tpu_custom_call.1} parent=1 // pred_check
      _
    $region7: #{tpu_custom_call.1} parent=1 // pred_check_branch
      %27 = sbr.rel (0) target = $region9
    $region8: #{tpu_custom_call.1} parent=1 // pred_region
      %s29 = ssub.s32 2048, 2048
      %30 = vsyncadd [#allocation6], %s29
      %s31 = sshll.u32 [#allocation5], 4
      %s32 = int_to_ptr.vmem [resolvable:$true] %s31
      %37 = dma.hbm_to_vmem [thread:$0]  %s1, 2048, %s32, [#allocation6], 128, 128, 8
    $region9: #{tpu_custom_call.1} parent=1 // pred_fallthru
      _
    // Predicated region
    $region10: #{tpu_custom_call.1} parent=1 // pred_check
      _
    $region11: #{tpu_custom_call.1} parent=1 // pred_check_branch
      %39 = sbr.rel (0) target = $region13
    $region12: #{tpu_custom_call.1} parent=1 // pred_region
      _
    $region13: #{tpu_custom_call.1} parent=1 // pred_fallthru
      _
    // Predicated region
    $region14: #{tpu_custom_call.1} parent=1 // pred_check
      _
    $region15: #{tpu_custom_call.1} parent=1 // pred_check_branch
      %41 = sbr.rel (0) target = $region17
    $region16: #{tpu_custom_call.1} parent=1 // pred_region
      %s43 = ssub.s32 2048, 2048
      %44 = vsyncadd [#allocation6], %s43
      %s45 = sshll.u32 [#allocation7], 4
      %s46 = int_to_ptr.vmem [resolvable:$true] %s45
      %51 = dma.hbm_to_vmem [thread:$0]  %s3, 2048, %s46, [#allocation6], 64, 64, 4
    $region17: #{tpu_custom_call.1} parent=1 // pred_fallthru
      _
    // Predicated region
    $region18: #{tpu_custom_call.1} parent=1 // pred_check
      _
    $region19: #{tpu_custom_call.1} parent=1 // pred_check_branch
      %53 = sbr.rel (0) target = $region21
    $region20: #{tpu_custom_call.1} parent=1 // pred_region
      _
    $region21: #{tpu_custom_call.1} parent=1 // pred_fallthru
      _
    // Predicated region
    $region22: #{tpu_custom_call.1} parent=1 // pred_check
      _
    $region23: #{tpu_custom_call.1} parent=1 // pred_check_branch
      %55 = sbr.rel (0) target = $region25
    $region24: #{tpu_custom_call.1} parent=1 // pred_region
      %s57 = ssub.s32 1024, 1024
      %58 = vsyncadd [#allocation9], %s57
      %s59 = sshll.u32 [#allocation8], 4
      %s60 = int_to_ptr.vmem [resolvable:$true] %s59
      %65 = dma.hbm_to_vmem [thread:$0]  %s5, 1024, %s60, [#allocation9], 64, 64, 4
    $region25: #{tpu_custom_call.1} parent=1 // pred_fallthru
      _
    // Predicated region
    $region26: #{tpu_custom_call.1} parent=1 // pred_check
      _
    $region27: #{tpu_custom_call.1} parent=1 // pred_check_branch
      %67 = sbr.rel (0) target = $region29
    $region28: #{tpu_custom_call.1} parent=1 // pred_region
      _
    $region29: #{tpu_custom_call.1} parent=1 // pred_fallthru
      _
    // Predicated region
    $region30: #{tpu_custom_call.1} parent=1 // pred_check
      _
    $region31: #{tpu_custom_call.1} parent=1 // pred_check_branch
      %69 = sbr.rel (0) target = $region33
    $region32: #{tpu_custom_call.1} parent=1 // pred_region
      %70 = dma.done [#allocation3], 128
    $region33: #{tpu_custom_call.1} parent=1 // pred_fallthru
      _
    // Predicated region
    $region34: #{tpu_custom_call.1} parent=1 // pred_check
      _
    $region35: #{tpu_custom_call.1} parent=1 // pred_check_branch
      %72 = sbr.rel (0) target = $region37
    $region36: #{tpu_custom_call.1} parent=1 // pred_region
      %73 = dma.done [#allocation6], 2048
    $region37: #{tpu_custom_call.1} parent=1 // pred_fallthru
      _
    // Predicated region
    $region38: #{tpu_custom_call.1} parent=1 // pred_check
      _
    $region39: #{tpu_custom_call.1} parent=1 // pred_check_branch
      %75 = sbr.rel (0) target = $region41
    $region40: #{tpu_custom_call.1} parent=1 // pred_region
      %76 = dma.done [#allocation6], 2048
    $region41: #{tpu_custom_call.1} parent=1 // pred_fallthru
      _
    // Predicated region
    $region42: #{tpu_custom_call.1} parent=1 // pred_check
      _
    $region43: #{tpu_custom_call.1} parent=1 // pred_check_branch
      %78 = sbr.rel (0) target = $region45
    $region44: #{tpu_custom_call.1} parent=1 // pred_region
      %79 = dma.done [#allocation9], 1024
    $region45: #{tpu_custom_call.1} parent=1 // pred_fallthru
      _
    %v81 = vld [vmem:[#allocation2] sm:$0xff]
    %v82 = vpack.c.bf16 %v81, %v81
    %v83 = vld [vmem:[#allocation5] sm:$0xff]
    %v84 = vld [vmem:[#allocation5 + $0x8] sm:$0xff]
    %v85 = vld [vmem:[#allocation5 + $0x10] sm:$0xff]
    %v86 = vld [vmem:[#allocation5 + $0x18] sm:$0xff]
    %v87 = vld [vmem:[#allocation5 + $0x20] sm:$0xff]
    %v88 = vld [vmem:[#allocation5 + $0x28] sm:$0xff]
    %v89 = vld [vmem:[#allocation5 + $0x30] sm:$0xff]
    %v90 = vld [vmem:[#allocation5 + $0x38] sm:$0xff]
    %v91 = vld [vmem:[#allocation5 + $0x40] sm:$0xff]
    %v92 = vld [vmem:[#allocation5 + $0x48] sm:$0xff]
    %v93 = vld [vmem:[#allocation5 + $0x50] sm:$0xff]
    %v94 = vld [vmem:[#allocation5 + $0x58] sm:$0xff]
    %v95 = vld [vmem:[#allocation5 + $0x60] sm:$0xff]
    %v96 = vld [vmem:[#allocation5 + $0x68] sm:$0xff]
    %v97 = vld [vmem:[#allocation5 + $0x70] sm:$0xff]
    %v98 = vld [vmem:[#allocation5 + $0x78] sm:$0xff]
    %v99 = vld [vmem:[%s2] sm:$0x3]
    %v101 = vlaneseq
    %v102 = vshrl.u32 %v101, 7
    %v103 = vsub.s32 0, %v102
    %v104 = vrot.slane %v99, %v103
    %v105 = vlaneseq
    %v106 = vshrl.u32 %v105, 7
    %v107 = vsub.s32 1, %v106
    %v108 = vrot.slane %v99, %v107
    %v127 = vunpack.c.l.b16 %v83
    %v128 = vunpack.c.h.b16 %v83
    %v129 = vunpack.c.l.b16 %v84
    %v130 = vunpack.c.h.b16 %v84
    %v131 = vunpack.c.l.b16 %v85
    %v132 = vunpack.c.h.b16 %v85
    %v133 = vunpack.c.l.b16 %v86
    %v134 = vunpack.c.h.b16 %v86
    %v135 = vunpack.c.l.b16 %v87
    %v136 = vunpack.c.h.b16 %v87
    %v137 = vunpack.c.l.b16 %v88
    %v138 = vunpack.c.h.b16 %v88
    %v139 = vunpack.c.l.b16 %v89
    %v140 = vunpack.c.h.b16 %v89
    %v141 = vunpack.c.l.b16 %v90
    %v142 = vunpack.c.h.b16 %v90
    %v143 = vunpack.c.l.b16 %v91
    %v144 = vunpack.c.h.b16 %v91
    %v145 = vunpack.c.l.b16 %v92
    %v146 = vunpack.c.h.b16 %v92
    %v147 = vunpack.c.l.b16 %v93
    %v148 = vunpack.c.h.b16 %v93
    %v149 = vunpack.c.l.b16 %v94
    %v150 = vunpack.c.h.b16 %v94
    %v151 = vunpack.c.l.b16 %v95
    %v152 = vunpack.c.h.b16 %v95
    %v153 = vunpack.c.l.b16 %v96
    %v154 = vunpack.c.h.b16 %v96
    %v155 = vunpack.c.l.b16 %v97
    %v156 = vunpack.c.h.b16 %v97
    %v157 = vunpack.c.l.b16 %v98
    %v158 = vunpack.c.h.b16 %v98
    %v159 = vpack.c.b16 %v129, %v127
    %v160 = vpack.c.b16 %v130, %v128
    %v161 = vpack.c.b16 %v133, %v131
    %v162 = vpack.c.b16 %v134, %v132
    %v163 = vpack.c.b16 %v137, %v135
    %v164 = vpack.c.b16 %v138, %v136
    %v165 = vpack.c.b16 %v141, %v139
    %v166 = vpack.c.b16 %v142, %v140
    %v167 = vpack.c.b16 %v145, %v143
    %v168 = vpack.c.b16 %v146, %v144
    %v169 = vpack.c.b16 %v149, %v147
    %v170 = vpack.c.b16 %v150, %v148
    %v171 = vpack.c.b16 %v153, %v151
    %v172 = vpack.c.b16 %v154, %v152
    %v173 = vpack.c.b16 %v157, %v155
    %v174 = vpack.c.b16 %v158, %v156
    %191 = vmatprep.subr.bf16.mxu0 %v160
    %192 = vmatpush1.bf16.msra.mxu0 %v159
    %193 = vmatprep.subr.bf16.mxu0 %v162
    %194 = vmatpush1.bf16.msra.mxu0 %v161
    %195 = vmatprep.subr.bf16.mxu0 %v164
    %196 = vmatpush1.bf16.msra.mxu0 %v163
    %197 = vmatprep.subr.bf16.mxu0 %v166
    %198 = vmatpush1.bf16.msra.mxu0 %v165
    %199 = vmatprep.subr.bf16.mxu0 %v168
    %200 = vmatpush1.bf16.msra.mxu0 %v167
    %201 = vmatprep.subr.bf16.mxu0 %v170
    %202 = vmatpush1.bf16.msra.mxu0 %v169
    %203 = vmatprep.subr.bf16.mxu0 %v172
    %204 = vmatpush1.bf16.msra.mxu0 %v171
    %205 = vmatprep.subr.bf16.mxu0 %v174
    %206 = vmatpush1.bf16.msra.mxu0 %v173
    %207 = vmatprep.subr.bf16.mxu0 0
    %208 = vmatpush1.bf16.msra.mxu0 0
    %209 = vmatprep.subr.bf16.mxu0 0
    %210 = vmatpush1.bf16.msra.mxu0 0
    %211 = vmatprep.subr.bf16.mxu0 0
    %212 = vmatpush1.bf16.msra.mxu0 0
    %213 = vmatprep.subr.bf16.mxu0 0
    %214 = vmatpush1.bf16.msra.mxu0 0
    %215 = vmatprep.subr.bf16.mxu0 0
    %216 = vmatpush1.bf16.msra.mxu0 0
    %217 = vmatprep.subr.bf16.mxu0 0
    %218 = vmatpush1.bf16.msra.mxu0 0
    %219 = vmatprep.subr.bf16.mxu0 0
    %220 = vmatpush1.bf16.msra.mxu0 0
    %221 = vmatprep.subr.bf16.mxu0 0
    %222 = vmatpush1.bf16.msra.mxu0 0
    %223 = vmatprep.mubr.bf16.mxu0 0
    %224 = vmatmul.mubr.bf16.gmra.mrb[0].mxu0 %v82
    %v225 = vpop.f32.mrb[0].mxu0
    %v226 = vadd.f32 %v104, %v225
    %v227 = vpop.f32.mrb[0].mxu0
    %v228 = vadd.f32 %v108, %v227
    %v229 = vpop.f32.mrb[0].mxu0
    %v230 = vpop.f32.mrb[0].mxu0
    %231 = vdwg.mxu0
    %v232 = vmax.f32 %v226, 0.0
    %v233 = vmax.f32 %v228, 0.0
    %v234 = vpack.c.bf16 %v232, %v232
    %v235 = vpack.c.bf16 %v233, %v233
    %v236 = vld [vmem:[#allocation7] sm:$0xf]
    %v237 = vld [vmem:[#allocation7 + $0x4] sm:$0xf]
    %v238 = vld [vmem:[#allocation7 + $0x8] sm:$0xf]
    %v239 = vld [vmem:[#allocation7 + $0xc] sm:$0xf]
    %v240 = vld [vmem:[#allocation7 + $0x10] sm:$0xf]
    %v241 = vld [vmem:[#allocation7 + $0x14] sm:$0xf]
    %v242 = vld [vmem:[#allocation7 + $0x18] sm:$0xf]
    %v243 = vld [vmem:[#allocation7 + $0x1c] sm:$0xf]
    %v244 = vld [vmem:[#allocation7 + $0x20] sm:$0xf]
    %v245 = vld [vmem:[#allocation7 + $0x24] sm:$0xf]
    %v246 = vld [vmem:[#allocation7 + $0x28] sm:$0xf]
    %v247 = vld [vmem:[#allocation7 + $0x2c] sm:$0xf]
    %v248 = vld [vmem:[#allocation7 + $0x30] sm:$0xf]
    %v249 = vld [vmem:[#allocation7 + $0x34] sm:$0xf]
    %v250 = vld [vmem:[#allocation7 + $0x38] sm:$0xf]
    %v251 = vld [vmem:[#allocation7 + $0x3c] sm:$0xf]
    %v252 = vld [vmem:[#allocation7 + $0x40] sm:$0xf]
    %v253 = vld [vmem:[#allocation7 + $0x44] sm:$0xf]
    %v254 = vld [vmem:[#allocation7 + $0x48] sm:$0xf]
    %v255 = vld [vmem:[#allocation7 + $0x4c] sm:$0xf]
    %v256 = vld [vmem:[#allocation7 + $0x50] sm:$0xf]
    %v257 = vld [vmem:[#allocation7 + $0x54] sm:$0xf]
    %v258 = vld [vmem:[#allocation7 + $0x58] sm:$0xf]
    %v259 = vld [vmem:[#allocation7 + $0x5c] sm:$0xf]
    %v260 = vld [vmem:[#allocation7 + $0x60] sm:$0xf]
    %v261 = vld [vmem:[#allocation7 + $0x64] sm:$0xf]
    %v262 = vld [vmem:[#allocation7 + $0x68] sm:$0xf]
    %v263 = vld [vmem:[#allocation7 + $0x6c] sm:$0xf]
    %v264 = vld [vmem:[#allocation7 + $0x70] sm:$0xf]
    %v265 = vld [vmem:[#allocation7 + $0x74] sm:$0xf]
    %v266 = vld [vmem:[#allocation7 + $0x78] sm:$0xf]
    %v267 = vld [vmem:[#allocation7 + $0x7c] sm:$0xf]
    %v268 = vld [vmem:[%s4] sm:$0x1]
    %v270 = vlaneseq
    %v271 = vshrl.u32 %v270, 7
    %v272 = vsub.s32 0, %v271
    %v273 = vrot.slane %v268, %v272
    %v307 = vunpack.c.l.b16 %v236
    %v308 = vunpack.c.l.b16 %v237
    %v309 = vunpack.c.l.b16 %v238
    %v310 = vunpack.c.l.b16 %v239
    %v311 = vunpack.c.l.b16 %v240
    %v312 = vunpack.c.l.b16 %v241
    %v313 = vunpack.c.l.b16 %v242
    %v314 = vunpack.c.l.b16 %v243
    %v315 = vunpack.c.l.b16 %v244
    %v316 = vunpack.c.l.b16 %v245
    %v317 = vunpack.c.l.b16 %v246
    %v318 = vunpack.c.l.b16 %v247
    %v319 = vunpack.c.l.b16 %v248
    %v320 = vunpack.c.l.b16 %v249
    %v321 = vunpack.c.l.b16 %v250
    %v322 = vunpack.c.l.b16 %v251
    %v323 = vunpack.c.l.b16 %v252
    %v324 = vunpack.c.l.b16 %v253
    %v325 = vunpack.c.l.b16 %v254
    %v326 = vunpack.c.l.b16 %v255
    %v327 = vunpack.c.l.b16 %v256
    %v328 = vunpack.c.l.b16 %v257
    %v329 = vunpack.c.l.b16 %v258
    %v330 = vunpack.c.l.b16 %v259
    %v331 = vunpack.c.l.b16 %v260
    %v332 = vunpack.c.l.b16 %v261
    %v333 = vunpack.c.l.b16 %v262
    %v334 = vunpack.c.l.b16 %v263
    %v335 = vunpack.c.l.b16 %v264
    %v336 = vunpack.c.l.b16 %v265
    %v337 = vunpack.c.l.b16 %v266
    %v338 = vunpack.c.l.b16 %v267
    %v339 = vpack.c.b16 %v308, %v307
    %v340 = vpack.c.b16 %v310, %v309
    %v341 = vpack.c.b16 %v312, %v311
    %v342 = vpack.c.b16 %v314, %v313
    %v343 = vpack.c.b16 %v316, %v315
    %v344 = vpack.c.b16 %v318, %v317
    %v345 = vpack.c.b16 %v320, %v319
    %v346 = vpack.c.b16 %v322, %v321
    %v347 = vpack.c.b16 %v324, %v323
    %v348 = vpack.c.b16 %v326, %v325
    %v349 = vpack.c.b16 %v328, %v327
    %v350 = vpack.c.b16 %v330, %v329
    %v351 = vpack.c.b16 %v332, %v331
    %v352 = vpack.c.b16 %v334, %v333
    %v353 = vpack.c.b16 %v336, %v335
    %v354 = vpack.c.b16 %v338, %v337
    %371 = vmatprep.subr.bf16.mxu0 0
    %372 = vmatpush1.bf16.msra.mxu0 %v339
    %373 = vmatprep.subr.bf16.mxu0 0
    %374 = vmatpush1.bf16.msra.mxu0 %v340
    %375 = vmatprep.subr.bf16.mxu0 0
    %376 = vmatpush1.bf16.msra.mxu0 %v341
    %377 = vmatprep.subr.bf16.mxu0 0
    %378 = vmatpush1.bf16.msra.mxu0 %v342
    %379 = vmatprep.subr.bf16.mxu0 0
    %380 = vmatpush1.bf16.msra.mxu0 %v343
    %381 = vmatprep.subr.bf16.mxu0 0
    %382 = vmatpush1.bf16.msra.mxu0 %v344
    %383 = vmatprep.subr.bf16.mxu0 0
    %384 = vmatpush1.bf16.msra.mxu0 %v345
    %385 = vmatprep.subr.bf16.mxu0 0
    %386 = vmatpush1.bf16.msra.mxu0 %v346
    %387 = vmatprep.subr.bf16.mxu0 0
    %388 = vmatpush1.bf16.msra.mxu0 %v347
    %389 = vmatprep.subr.bf16.mxu0 0
    %390 = vmatpush1.bf16.msra.mxu0 %v348
    %391 = vmatprep.subr.bf16.mxu0 0
    %392 = vmatpush1.bf16.msra.mxu0 %v349
    %393 = vmatprep.subr.bf16.mxu0 0
    %394 = vmatpush1.bf16.msra.mxu0 %v350
    %395 = vmatprep.subr.bf16.mxu0 0
    %396 = vmatpush1.bf16.msra.mxu0 %v351
    %397 = vmatprep.subr.bf16.mxu0 0
    %398 = vmatpush1.bf16.msra.mxu0 %v352
    %399 = vmatprep.subr.bf16.mxu0 0
    %400 = vmatpush1.bf16.msra.mxu0 %v353
    %401 = vmatprep.subr.bf16.mxu0 0
    %402 = vmatpush1.bf16.msra.mxu0 %v354
    %403 = vmatprep.mubr.bf16.mxu0 %v235
    %404 = vmatmul.mubr.bf16.gmra.mrb[0].mxu0 %v234
    %v405 = vpop.f32.mrb[0].mxu0
    %v406 = vadd.f32 %v273, %v405
    %v407 = vpop.f32.mrb[0].mxu0
    %v408 = vpop.f32.mrb[0].mxu0
    %v409 = vpop.f32.mrb[0].mxu0
    %410 = vdwg.mxu0
    %v411 = vmax.f32 %v406, 0.0
    %v412 = vpack.c.bf16 %v411, %v411
    %v413 = vld [vmem:[#allocation8] sm:$0xf]
    %v414 = vld [vmem:[#allocation8 + $0x4] sm:$0xf]
    %v415 = vld [vmem:[#allocation8 + $0x8] sm:$0xf]
    %v416 = vld [vmem:[#allocation8 + $0xc] sm:$0xf]
    %v417 = vld [vmem:[#allocation8 + $0x10] sm:$0xf]
    %v418 = vld [vmem:[#allocation8 + $0x14] sm:$0xf]
    %v419 = vld [vmem:[#allocation8 + $0x18] sm:$0xf]
    %v420 = vld [vmem:[#allocation8 + $0x1c] sm:$0xf]
    %v421 = vld [vmem:[#allocation8 + $0x20] sm:$0xf]
    %v422 = vld [vmem:[#allocation8 + $0x24] sm:$0xf]
    %v423 = vld [vmem:[#allocation8 + $0x28] sm:$0xf]
    %v424 = vld [vmem:[#allocation8 + $0x2c] sm:$0xf]
    %v425 = vld [vmem:[#allocation8 + $0x30] sm:$0xf]
    %v426 = vld [vmem:[#allocation8 + $0x34] sm:$0xf]
    %v427 = vld [vmem:[#allocation8 + $0x38] sm:$0xf]
    %v428 = vld [vmem:[#allocation8 + $0x3c] sm:$0xf]
    %v429 = vld [vmem:[%s6] sm:$0x1]
    %v431 = vlaneseq
    %v432 = vshrl.u32 %v431, 7
    %v433 = vsub.s32 0, %v432
    %v434 = vrot.slane %v429, %v433
    %v452 = vunpack.c.l.b16 %v413
    %v453 = vunpack.c.l.b16 %v414
    %v454 = vunpack.c.l.b16 %v415
    %v455 = vunpack.c.l.b16 %v416
    %v456 = vunpack.c.l.b16 %v417
    %v457 = vunpack.c.l.b16 %v418
    %v458 = vunpack.c.l.b16 %v419
    %v459 = vunpack.c.l.b16 %v420
    %v460 = vunpack.c.l.b16 %v421
    %v461 = vunpack.c.l.b16 %v422
    %v462 = vunpack.c.l.b16 %v423
    %v463 = vunpack.c.l.b16 %v424
    %v464 = vunpack.c.l.b16 %v425
    %v465 = vunpack.c.l.b16 %v426
    %v466 = vunpack.c.l.b16 %v427
    %v467 = vunpack.c.l.b16 %v428
    %v468 = vpack.c.b16 %v453, %v452
    %v469 = vpack.c.b16 %v455, %v454
    %v470 = vpack.c.b16 %v457, %v456
    %v471 = vpack.c.b16 %v459, %v458
    %v472 = vpack.c.b16 %v461, %v460
    %v473 = vpack.c.b16 %v463, %v462
    %v474 = vpack.c.b16 %v465, %v464
    %v475 = vpack.c.b16 %v467, %v466
    %484 = vmatprep.subr.bf16.mxu0 0
    %485 = vmatpush1.bf16.msra.mxu0 %v468
    %486 = vmatprep.subr.bf16.mxu0 0
    %487 = vmatpush1.bf16.msra.mxu0 %v469
    %488 = vmatprep.subr.bf16.mxu0 0
    %489 = vmatpush1.bf16.msra.mxu0 %v470
    %490 = vmatprep.subr.bf16.mxu0 0
    %491 = vmatpush1.bf16.msra.mxu0 %v471
    %492 = vmatprep.subr.bf16.mxu0 0
    %493 = vmatpush1.bf16.msra.mxu0 %v472
    %494 = vmatprep.subr.bf16.mxu0 0
    %495 = vmatpush1.bf16.msra.mxu0 %v473
    %496 = vmatprep.subr.bf16.mxu0 0
    %497 = vmatpush1.bf16.msra.mxu0 %v474
    %498 = vmatprep.subr.bf16.mxu0 0
    %499 = vmatpush1.bf16.msra.mxu0 %v475
    %500 = vmatprep.subr.bf16.mxu0 0
    %501 = vmatpush1.bf16.msra.mxu0 0
    %502 = vmatprep.subr.bf16.mxu0 0
    %503 = vmatpush1.bf16.msra.mxu0 0
    %504 = vmatprep.subr.bf16.mxu0 0
    %505 = vmatpush1.bf16.msra.mxu0 0
    %506 = vmatprep.subr.bf16.mxu0 0
    %507 = vmatpush1.bf16.msra.mxu0 0
    %508 = vmatprep.subr.bf16.mxu0 0
    %509 = vmatpush1.bf16.msra.mxu0 0
    %510 = vmatprep.subr.bf16.mxu0 0
    %511 = vmatpush1.bf16.msra.mxu0 0
    %512 = vmatprep.subr.bf16.mxu0 0
    %513 = vmatpush1.bf16.msra.mxu0 0
    %514 = vmatprep.subr.bf16.mxu0 0
    %515 = vmatpush1.bf16.msra.mxu0 0
    %516 = vmatprep.mubr.bf16.mxu0 0
    %517 = vmatmul.mubr.bf16.gmra.mrb[0].mxu0 %v412
    %v518 = vpop.f32.mrb[0].mxu0
    %v519 = vadd.f32 %v434, %v518
    %v520 = vpop.f32.mrb[0].mxu0
    %v521 = vpop.f32.mrb[0].mxu0
    %v522 = vpop.f32.mrb[0].mxu0
    %523 = vdwg.mxu0
    %v524 = vmax.f32 %v519, -1.0
    %v525 = vmin.f32 %v524, 1.0
    %526 = vst [vmem:[#allocation10] sm:$0xff] %v525
    // Predicated region
    $region46: #{tpu_custom_call.1} parent=1 // pred_check
      _
    $region47: #{tpu_custom_call.1} parent=1 // pred_check_branch
      %528 = sbr.rel (0) target = $region49
    $region48: #{tpu_custom_call.1} parent=1 // pred_region
      %s530 = ssub.s32 128, 128
      %531 = vsyncadd [#allocation4], %s530
      %s533 = sshll.u32 [#allocation10], 4
      %s534 = int_to_ptr.vmem [resolvable:$true] %s533
      %536 = dma.vmem_to_hbm [thread:$0]  %s534, 128, %s7, [#allocation4]
    $region49: #{tpu_custom_call.1} parent=1 // pred_fallthru
      _
    // Predicated region
    $region50: #{tpu_custom_call.1} parent=1 // pred_check
      _
    $region51: #{tpu_custom_call.1} parent=1 // pred_check_branch
      %538 = sbr.rel (0) target = $region53
    $region52: #{tpu_custom_call.1} parent=1 // pred_region
      %539 = dma.done [#allocation4], 128
    $region53: #{tpu_custom_call.1} parent=1 // pred_fallthru
      _
    %540 = vsyncpa [#allocation3], 1
    %541 = vsyncpa [#allocation6], 1
    %542 = vsyncpa [#allocation9], 1
    %543 = vsyncpa [#allocation4], 1

</llo_original>
